<compile_context>
chip_gen: v6e
topology: v6e:2x2x1
jax: 0.10.0
libtpu: 0.0.40
codegen_flags: <defaults>
</compile_context>

<pallas_src>
import functools
import math

import jax
import jax.numpy as jnp
from jax.experimental import pallas as pl
from jax.experimental.pallas import tpu as pltpu

HIDDEN = 128   # the PyTorch module hardcodes 128 regardless of HIDDEN_LAYER_WIDTH
OUT_PAD = 128  # lane width of the fused head-2 matmul (num_actions + 1 must fit)


def dueling_dqn_kernel(x_ref, w_ref, aux_ref, out_ref, *, num_inputs, num_actions):
    hidden = HIDDEN
    batch = x_ref.shape[0]

    # ---- layer 1: feature Linear + ReLU, on the VPU in f32 -----------------
    # num_inputs is tiny (e.g. 4 for CartPole): an unrolled broadcast-FMA over
    # the K columns is cheaper and more robust than an MXU pass with K << 128.
    # TODO(synk): switch back to jnp.dot for num_inputs >~ 64.
    h = jnp.broadcast_to(aux_ref[num_inputs:num_inputs + 1, :hidden],
                         (batch, hidden))                       # bias bf, f32
    for k in range(num_inputs):
        h = h + x_ref[:, k:k + 1] * aux_ref[k:k + 1, :hidden]
    h = jnp.maximum(h, 0.0).astype(jnp.bfloat16)                # (B, 128)

    # ---- fused head hidden layers: ONE (128 x 256) MXU pass ----------------
    w2 = w_ref[0:hidden, :]                                     # (128, 256) bf16
    b2 = aux_ref[num_inputs + 1:num_inputs + 2, :]              # (1, 256)   f32
    hid = jnp.dot(h, w2, preferred_element_type=jnp.float32) + b2
    hid = jnp.maximum(hid, 0.0).astype(jnp.bfloat16)            # (B, 256)

    # ---- fused output projections: block-structured (256 x 128) MXU pass ---
    # head2[:, :A]   = adv_hidden @ Wa2 + ba2   (advantage)
    # head2[:,  A]   = val_hidden @ Wv2 + bv2   (value)
    # head2[:, A+1:] = 0 (structural padding)
    w3 = w_ref[hidden:3 * hidden, 0:OUT_PAD]                    # (256, 128) bf16
    b3 = aux_ref[num_inputs:num_inputs + 1, hidden:hidden + OUT_PAD]  # (1,128) f32
    head2 = jnp.dot(hid, w3, preferred_element_type=jnp.float32) + b3  # (B, 128)

    # ---- dueling combine: q = value + adv - mean(adv) (GLOBAL mean) --------
    val = head2[:, num_actions:num_actions + 1]                 # (B, 1)
    adv_sum = jnp.sum(head2) - jnp.sum(val)      # padding columns are exact zeros
    adv_mean = adv_sum * (1.0 / (batch * num_actions))
    out_ref[...] = head2[:, :num_actions] + val - adv_mean      # (B, A)


def init_params(key, num_inputs, num_actions, hidden=HIDDEN):
    """PyTorch-style uniform(+-1/sqrt(fan_in)) init. Weights stored (in, out)."""
    def linear(key, fan_in, fan_out):
        kw, kb = jax.random.split(key)
        bound = 1.0 / math.sqrt(fan_in)
        w = jax.random.uniform(kw, (fan_in, fan_out), jnp.float32, -bound, bound)
        b = jax.random.uniform(kb, (1, fan_out), jnp.float32, -bound, bound)
        return w, b

    keys = jax.random.split(key, 5)
    wf, bf = linear(keys[0], num_inputs, hidden)
    wa1, ba1 = linear(keys[1], hidden, hidden)
    wa2, ba2 = linear(keys[2], hidden, num_actions)
    wv1, bv1 = linear(keys[3], hidden, hidden)
    wv2, bv2 = linear(keys[4], hidden, 1)
    return dict(wf=wf, bf=bf, wa1=wa1, ba1=ba1, wa2=wa2, ba2=ba2,
                wv1=wv1, bv1=bv1, wv2=wv2, bv2=bv2)


def pack_params(params, num_inputs, num_actions):
    """Fuse/pad the 10 Linear tensors into 2 kernel buffers (w: bf16, aux: f32)."""
    hidden = HIDDEN
    assert num_actions + 1 <= OUT_PAD, "pad OUT_PAD up for large action spaces"

    # bf16 weight slab (3*hidden, 2*hidden) = (384, 256); tile-aligned blocks:
    #   rows [0,128)   : W2 = [Wa1 | Wv1]
    #   rows [128,384) : W3 block-structured in cols [0, OUT_PAD)
    w = jnp.zeros((3 * hidden, 2 * hidden), jnp.float32)
    w = w.at[:hidden, :hidden].set(params["wa1"])
    w = w.at[:hidden, hidden:].set(params["wv1"])
    w = w.at[hidden:2 * hidden, :num_actions].set(params["wa2"])
    w = w.at[2 * hidden:, num_actions].set(params["wv2"][:, 0])

    # f32 aux slab (num_inputs + 2, 2*hidden):
    #   rows [0, num_inputs), cols [0,128)  : W1 (kept f32 for the VPU layer 1)
    #   row  num_inputs,      cols [0,128)  : bf (layer-1 bias)
    #   row  num_inputs,      cols [128,256): b3 = [ba2 | bv2 | 0...]
    #   row  num_inputs + 1,  cols [0,256)  : b2 = [ba1 | bv1]
    aux = jnp.zeros((num_inputs + 2, 2 * hidden), jnp.float32)
    aux = aux.at[:num_inputs, :hidden].set(params["wf"])
    aux = aux.at[num_inputs, :hidden].set(params["bf"][0])
    aux = aux.at[num_inputs, hidden:hidden + num_actions].set(params["ba2"][0])
    aux = aux.at[num_inputs, hidden + num_actions].set(params["bv2"][0, 0])
    aux = aux.at[num_inputs + 1, :hidden].set(params["ba1"][0])
    aux = aux.at[num_inputs + 1, hidden:].set(params["bv1"][0])

    return dict(w=w.astype(jnp.bfloat16), aux=aux,
                num_inputs=num_inputs, num_actions=num_actions)


def dueling_dqn_forward(x, packed):
    """x: (B, num_inputs) f32 -> (B, num_actions) f32.  No wrapper-side ops."""
    B = x.shape[0]
    num_inputs = packed["num_inputs"]
    num_actions = packed["num_actions"]
    w, aux = packed["w"], packed["aux"]

    flops = 2 * B * (num_inputs * HIDDEN + HIDDEN * 2 * HIDDEN + 2 * HIDDEN * OUT_PAD)
    bytes_accessed = (x.size * 4 + w.size * 2 + aux.size * 4 + B * num_actions * 4)

    vmem = pl.BlockSpec(memory_space=pltpu.MemorySpace.VMEM)
    kernel = functools.partial(dueling_dqn_kernel, num_inputs=num_inputs,
                               num_actions=num_actions)
    return pl.pallas_call(
        kernel,
        out_shape=jax.ShapeDtypeStruct((B, num_actions), jnp.float32),
        in_specs=[vmem, vmem, vmem],
        out_specs=vmem,
        cost_estimate=pl.CostEstimate(flops=flops, transcendentals=0,
                                      bytes_accessed=bytes_accessed),
    )(x, w, aux)


def reference_forward(x, p):
    """Unfused reference matching the kernel's precision path:
    layer 1 fully f32; heads bf16-in / f32-accum; biases f32."""
    def mm(a, w):
        return jnp.dot(a.astype(jnp.bfloat16), w.astype(jnp.bfloat16),
                       preferred_element_type=jnp.float32)

    h = jnp.maximum(jnp.dot(x, p["wf"]) + p["bf"], 0.0)            # f32 layer 1
    a_h = jnp.maximum(mm(h, p["wa1"]) + p["ba1"], 0.0)
    v_h = jnp.maximum(mm(h, p["wv1"]) + p["bv1"], 0.0)
    adv = mm(a_h, p["wa2"]) + p["ba2"]
    val = mm(v_h, p["wv2"]) + p["bv2"]
    return val + adv - jnp.mean(adv)                                # global mean


if __name__ == "__main__":
    num_inputs = 4       # e.g. CartPole observation size
    num_actions = 2
    batch = 2
    hidden_layer_width = 32  # unused by the module (it hardcodes 128); kept for parity

    key = jax.random.PRNGKey(0)
    kx, kp = jax.random.split(key)
    x = jax.random.normal(kx, (batch, num_inputs), jnp.float32)
    params = init_params(kp, num_inputs, num_actions)
    packed = pack_params(params, num_inputs, num_actions)

    out = dueling_dqn_forward(x, packed)
    out = jax.block_until_ready(out)

    ref = reference_forward(x, params)
    assert out.shape == (batch, num_actions)
    assert jnp.allclose(out, ref, atol=1e-2, rtol=1e-2), (out, ref)

    print("KERNEL_OK")
</pallas_src>

<mosaic_0001>
module attributes {stable_mosaic.version = 11 : i64} {
  func.func @dueling_dqn_kernel(%arg0: memref<2x4xf32, #tpu.memory_space<vmem>>, %arg1: memref<384x256xbf16, #tpu.memory_space<vmem>>, %arg2: memref<6x256xf32, #tpu.memory_space<vmem>>, %arg3: memref<2x2xf32, #tpu.memory_space<vmem>>) attributes {dimension_semantics = [], scalar_prefetch = 0 : i64, scratch_operands = 0 : i64, tpu.core_type = #tpu.core_type<tc>} {
    %c4 = arith.constant 4 : index
    %c0 = arith.constant 0 : index
    %0 = vector.load %arg2[%c4, %c0] : memref<6x256xf32, #tpu.memory_space<vmem>>, vector<1x128xf32>
    %1 = vector.shape_cast %0 : vector<1x128xf32> to vector<1x128xf32>
    %2 = vector.broadcast %1 : vector<1x128xf32> to vector<2x128xf32>
    %c0_0 = arith.constant 0 : index
    %c0_1 = arith.constant 0 : index
    %3 = vector.load %arg0[%c0_0, %c0_1] : memref<2x4xf32, #tpu.memory_space<vmem>>, vector<2x1xf32>
    %c0_2 = arith.constant 0 : index
    %c0_3 = arith.constant 0 : index
    %4 = vector.load %arg2[%c0_2, %c0_3] : memref<6x256xf32, #tpu.memory_space<vmem>>, vector<1x128xf32>
    %5 = vector.broadcast %3 : vector<2x1xf32> to vector<2x128xf32>
    %6 = vector.broadcast %4 : vector<1x128xf32> to vector<2x128xf32>
    %7 = arith.mulf %5, %6 : vector<2x128xf32>
    %8 = arith.addf %2, %7 : vector<2x128xf32>
    %c0_4 = arith.constant 0 : index
    %c1 = arith.constant 1 : index
    %9 = vector.load %arg0[%c0_4, %c1] : memref<2x4xf32, #tpu.memory_space<vmem>>, vector<2x1xf32>
    %c1_5 = arith.constant 1 : index
    %c0_6 = arith.constant 0 : index
    %10 = vector.load %arg2[%c1_5, %c0_6] : memref<6x256xf32, #tpu.memory_space<vmem>>, vector<1x128xf32>
    %11 = vector.broadcast %9 : vector<2x1xf32> to vector<2x128xf32>
    %12 = vector.broadcast %10 : vector<1x128xf32> to vector<2x128xf32>
    %13 = arith.mulf %11, %12 : vector<2x128xf32>
    %14 = arith.addf %8, %13 : vector<2x128xf32>
    %c0_7 = arith.constant 0 : index
    %c2 = arith.constant 2 : index
    %15 = vector.load %arg0[%c0_7, %c2] : memref<2x4xf32, #tpu.memory_space<vmem>>, vector<2x1xf32>
    %c2_8 = arith.constant 2 : index
    %c0_9 = arith.constant 0 : index
    %16 = vector.load %arg2[%c2_8, %c0_9] : memref<6x256xf32, #tpu.memory_space<vmem>>, vector<1x128xf32>
    %17 = vector.broadcast %15 : vector<2x1xf32> to vector<2x128xf32>
    %18 = vector.broadcast %16 : vector<1x128xf32> to vector<2x128xf32>
    %19 = arith.mulf %17, %18 : vector<2x128xf32>
    %20 = arith.addf %14, %19 : vector<2x128xf32>
    %c0_10 = arith.constant 0 : index
    %c3 = arith.constant 3 : index
    %21 = vector.load %arg0[%c0_10, %c3] : memref<2x4xf32, #tpu.memory_space<vmem>>, vector<2x1xf32>
    %c3_11 = arith.constant 3 : index
    %c0_12 = arith.constant 0 : index
    %22 = vector.load %arg2[%c3_11, %c0_12] : memref<6x256xf32, #tpu.memory_space<vmem>>, vector<1x128xf32>
    %23 = vector.broadcast %21 : vector<2x1xf32> to vector<2x128xf32>
    %24 = vector.broadcast %22 : vector<1x128xf32> to vector<2x128xf32>
    %25 = arith.mulf %23, %24 : vector<2x128xf32>
    %26 = arith.addf %20, %25 : vector<2x128xf32>
    %cst = arith.constant 0.000000e+00 : f32
    %27 = vector.broadcast %cst : f32 to vector<2x128xf32>
    %28 = arith.maximumf %26, %27 : vector<2x128xf32>
    %29 = arith.truncf %28 : vector<2x128xf32> to vector<2x128xbf16>
    %c0_13 = arith.constant 0 : index
    %c0_14 = arith.constant 0 : index
    %30 = vector.load %arg1[%c0_13, %c0_14] : memref<384x256xbf16, #tpu.memory_space<vmem>>, vector<128x256xbf16>
    %c5 = arith.constant 5 : index
    %c0_15 = arith.constant 0 : index
    %31 = vector.load %arg2[%c5, %c0_15] : memref<6x256xf32, #tpu.memory_space<vmem>>, vector<1x256xf32>
    %cst_16 = arith.constant dense<0.000000e+00> : vector<2x256xf32>
    %32 = tpu.matmul %29, %30, %cst_16 {dimension_numbers = #tpu.dot_dimension_numbers<[1], [0], [0], [1], [0, 0, 1, 1], [], []>} : vector<2x128xbf16>, vector<128x256xbf16>, vector<2x256xf32> -> vector<2x256xf32>
    %33 = vector.broadcast %31 : vector<1x256xf32> to vector<2x256xf32>
    %34 = arith.addf %32, %33 : vector<2x256xf32>
    %cst_17 = arith.constant 0.000000e+00 : f32
    %35 = vector.broadcast %cst_17 : f32 to vector<2x256xf32>
    %36 = arith.maximumf %34, %35 : vector<2x256xf32>
    %37 = arith.truncf %36 : vector<2x256xf32> to vector<2x256xbf16>
    %c128 = arith.constant 128 : index
    %c0_18 = arith.constant 0 : index
    %38 = vector.load %arg1[%c128, %c0_18] : memref<384x256xbf16, #tpu.memory_space<vmem>>, vector<256x128xbf16>
    %c4_19 = arith.constant 4 : index
    %c128_20 = arith.constant 128 : index
    %39 = vector.load %arg2[%c4_19, %c128_20] : memref<6x256xf32, #tpu.memory_space<vmem>>, vector<1x128xf32>
    %cst_21 = arith.constant dense<0.000000e+00> : vector<2x128xf32>
    %40 = tpu.matmul %37, %38, %cst_21 {dimension_numbers = #tpu.dot_dimension_numbers<[1], [0], [0], [1], [0, 0, 1, 1], [], []>} : vector<2x256xbf16>, vector<256x128xbf16>, vector<2x128xf32> -> vector<2x128xf32>
    %41 = vector.broadcast %39 : vector<1x128xf32> to vector<2x128xf32>
    %42 = arith.addf %40, %41 : vector<2x128xf32>
    %43 = vector.extract_strided_slice %42 {offsets = [0, 2], sizes = [2, 1], strides = [1, 1]} : vector<2x128xf32> to vector<2x1xf32>
    %44 = vector.shape_cast %42 : vector<2x128xf32> to vector<1x2x128xf32>
    %cst_22 = arith.constant dense<0.000000e+00> : vector<1xf32>
    %45 = vector.multi_reduction <add>, %44, %cst_22 [1, 2] : vector<1x2x128xf32> to vector<1xf32>
    %46 = vector.shape_cast %45 : vector<1xf32> to vector<1x1x1xf32>
    %47 = vector.extract %46[0, 0, 0] : f32 from vector<1x1x1xf32>
    %48 = vector.shape_cast %43 : vector<2x1xf32> to vector<1x2x1xf32>
    %cst_23 = arith.constant dense<0.000000e+00> : vector<1xf32>
    %49 = vector.multi_reduction <add>, %48, %cst_23 [1, 2] : vector<1x2x1xf32> to vector<1xf32>
    %50 = vector.shape_cast %49 : vector<1xf32> to vector<1x1x1xf32>
    %51 = vector.extract %50[0, 0, 0] : f32 from vector<1x1x1xf32>
    %52 = arith.subf %47, %51 : f32
    %cst_24 = arith.constant 2.500000e-01 : f32
    %53 = arith.mulf %52, %cst_24 : f32
    %54 = vector.extract_strided_slice %42 {offsets = [0, 0], sizes = [2, 2], strides = [1, 1]} : vector<2x128xf32> to vector<2x2xf32>
    %55 = vector.broadcast %43 : vector<2x1xf32> to vector<2x2xf32>
    %56 = arith.addf %54, %55 : vector<2x2xf32>
    %57 = vector.broadcast %53 : f32 to vector<2x2xf32>
    %58 = arith.subf %56, %57 : vector<2x2xf32>
    %c0_25 = arith.constant 0 : index
    %c0_26 = arith.constant 0 : index
    %59 = vector.load %arg3[%c0_25, %c0_26] : memref<2x2xf32, #tpu.memory_space<vmem>>, vector<2x2xf32>
    tpu.vector_store %arg3[%c0_25, %c0_26], %58 {strides = array<i32>} : memref<2x2xf32, #tpu.memory_space<vmem>>, vector<2x2xf32>,
    return
  }
}

</mosaic_0001>

<llo_original>
// kernel: tpu_custom_call.1
$region0: #{tpu_custom_call.1}
  #allocation0 [shape = 'u32[]', space=smem, size = 0x4, offset = 0x4, fixed_abs, tag = 'smem constant byte address 0x4 - core index']
  #allocation1 [shape = 'u32[144,128]{1,0:T(1,128)}', space=vmem, size = 0x12000, scoped, tag = 'internal scratch']
  %s0 = inlined_call_operand.hbm [shape: f32[2,4], index: 0, kind: input, shape index: {}]
  %s1 = inlined_call_operand.hbm [shape: bf16[384,256], index: 1, kind: input, shape index: {}]
  %s2 = inlined_call_operand.hbm [shape: f32[6,256], index: 2, kind: input, shape index: {}]
  %s3 = inlined_call_operand.hbm [shape: f32[2,2], index: 3, kind: output, shape index: {}]
  %s4 = sld [smem:[#allocation0]]
  $region34: #{tpu_custom_call.1} parent=0
    _
  %s6 = ssub.s32 1, %s4
  %s7 = scalar_select 0, %s6, %s4
  $region1: #{tpu_custom_call.1} parent=0
    #allocation2 [shape = 'u8[1024]{0}', space=vmem, size = 0x400, scoped, tag = 'input window, operand 0, single buffered']
    #allocation3 [shape = 's32[1]{0}', space=sflag, size = 0x4, scoped, tag = 'scoped memory for tpu_custom_call.1']
    #allocation4 [shape = 's32[1]{0}', space=sflag, size = 0x4, scoped, tag = 'scoped memory for tpu_custom_call.1']
    #allocation5 [shape = 'u8[196608]{0}', space=vmem, size = 0x30000, scoped, tag = 'input window, operand 1, single buffered']
    #allocation6 [shape = 's32[1]{0}', space=sflag, size = 0x4, scoped, tag = 'scoped memory for tpu_custom_call.1']
    #allocation7 [shape = 'u8[8192]{0}', space=vmem, size = 0x2000, scoped, tag = 'input window, operand 2, single buffered']
    #allocation8 [shape = 'u8[1024]{0}', space=vmem, size = 0x400, scoped, tag = 'output window, operand 0, single buffered']
    %8 = vsyncpa [#allocation3], 0
    %9 = vsyncpa [#allocation6], 0
    %10 = vsyncpa [#allocation4], 0
    // Predicated region
    $region2: #{tpu_custom_call.1} parent=1 // pred_check
      _
    $region3: #{tpu_custom_call.1} parent=1 // pred_check_branch
      %12 = sbr.rel (0) target = $region5
    $region4: #{tpu_custom_call.1} parent=1 // pred_region
      %s14 = ssub.s32 32, 32
      %15 = vsyncadd [#allocation3], %s14
      %s17 = sshll.u32 [#allocation2], 4
      %s18 = int_to_ptr.vmem [resolvable:$true] %s17
      %20 = dma.hbm_to_vmem [thread:$0]  %s0, 32, %s18, [#allocation3]
    $region5: #{tpu_custom_call.1} parent=1 // pred_fallthru
      _
    // Predicated region
    $region6: #{tpu_custom_call.1} parent=1 // pred_check
      _
    $region7: #{tpu_custom_call.1} parent=1 // pred_check_branch
      %22 = sbr.rel (0) target = $region9
    $region8: #{tpu_custom_call.1} parent=1 // pred_region
      %s24 = ssub.s32 6144, 6144
      %25 = vsyncadd [#allocation6], %s24
      %s26 = sshll.u32 [#allocation5], 4
      %s27 = int_to_ptr.vmem [resolvable:$true] %s26
      %32 = dma.hbm_to_vmem [thread:$0]  %s1, 6144, %s27, [#allocation6], 128, 128, 8
    $region9: #{tpu_custom_call.1} parent=1 // pred_fallthru
      _
    // Predicated region
    $region10: #{tpu_custom_call.1} parent=1 // pred_check
      _
    $region11: #{tpu_custom_call.1} parent=1 // pred_check_branch
      %34 = sbr.rel (0) target = $region13
    $region12: #{tpu_custom_call.1} parent=1 // pred_region
      %s36 = ssub.s32 256, 256
      %37 = vsyncadd [#allocation6], %s36
      %s39 = sshll.u32 [#allocation7], 4
      %s40 = int_to_ptr.vmem [resolvable:$true] %s39
      %42 = dma.hbm_to_vmem [thread:$0]  %s2, 256, %s40, [#allocation6]
    $region13: #{tpu_custom_call.1} parent=1 // pred_fallthru
      _
    // Predicated region
    $region14: #{tpu_custom_call.1} parent=1 // pred_check
      _
    $region15: #{tpu_custom_call.1} parent=1 // pred_check_branch
      %44 = sbr.rel (0) target = $region17
    $region16: #{tpu_custom_call.1} parent=1 // pred_region
      %45 = dma.done [#allocation3], 32
    $region17: #{tpu_custom_call.1} parent=1 // pred_fallthru
      _
    // Predicated region
    $region18: #{tpu_custom_call.1} parent=1 // pred_check
      _
    $region19: #{tpu_custom_call.1} parent=1 // pred_check_branch
      %47 = sbr.rel (0) target = $region21
    $region20: #{tpu_custom_call.1} parent=1 // pred_region
      %48 = dma.done [#allocation6], 6144
    $region21: #{tpu_custom_call.1} parent=1 // pred_fallthru
      _
    // Predicated region
    $region22: #{tpu_custom_call.1} parent=1 // pred_check
      _
    $region23: #{tpu_custom_call.1} parent=1 // pred_check_branch
      %50 = sbr.rel (0) target = $region25
    $region24: #{tpu_custom_call.1} parent=1 // pred_region
      %51 = dma.done [#allocation6], 256
    $region25: #{tpu_custom_call.1} parent=1 // pred_fallthru
      _
    %v53 = vld [vmem:[#allocation7 + $0x4] ss:$0 sm:$0xff]
    %v54 = vld [vmem:[#allocation2] sm:$0x3]
    %v55 = vld [vmem:[#allocation7] ss:$0 sm:$0xff]
    %57 = vset.pattern.permute.xlu0 0
    %58 = vperm.xlu0 %57, %v54
    %v59 = vpop.permute.xlu0 %58
    %v61 = vmul.f32 %v59, %v55
    %v62 = vadd.f32 %v53, %v61
    %v63 = vld [vmem:[#allocation7 + $0x1] ss:$0 sm:$0xff]
    %64 = vset.pattern.permute.xlu0 1
    %65 = vperm.xlu0 %64, %v54
    %v66 = vpop.permute.xlu0 %65
    %v68 = vmul.f32 %v66, %v63
    %v69 = vadd.f32 %v62, %v68
    %v70 = vld [vmem:[#allocation7 + $0x2] ss:$0 sm:$0xff]
    %71 = vset.pattern.permute.xlu0 2
    %72 = vperm.xlu0 %71, %v54
    %v73 = vpop.permute.xlu0 %72
    %v75 = vmul.f32 %v73, %v70
    %v76 = vadd.f32 %v69, %v75
    %v77 = vld [vmem:[#allocation7 + $0x3] ss:$0 sm:$0xff]
    %78 = vset.pattern.permute.xlu0 3
    %79 = vperm.xlu0 %78, %v54
    %v80 = vpop.permute.xlu0 %79
    %v82 = vmul.f32 %v80, %v77
    %v83 = vadd.f32 %v76, %v82
    %v84 = vmax.f32 %v83, 0.0
    %v85 = vpack.c.bf16 %v84, %v84
    %v86 = vld [vmem:[#allocation5] sm:$0xff]
    %v87 = vld [vmem:[#allocation5 + $0x8] sm:$0xff]
    %v88 = vld [vmem:[#allocation5 + $0x10] sm:$0xff]
    %v89 = vld [vmem:[#allocation5 + $0x18] sm:$0xff]
    %v90 = vld [vmem:[#allocation5 + $0x20] sm:$0xff]
    %v91 = vld [vmem:[#allocation5 + $0x28] sm:$0xff]
    %v92 = vld [vmem:[#allocation5 + $0x30] sm:$0xff]
    %v93 = vld [vmem:[#allocation5 + $0x38] sm:$0xff]
    %v94 = vld [vmem:[#allocation5 + $0x40] sm:$0xff]
    %v95 = vld [vmem:[#allocation5 + $0x48] sm:$0xff]
    %v96 = vld [vmem:[#allocation5 + $0x50] sm:$0xff]
    %v97 = vld [vmem:[#allocation5 + $0x58] sm:$0xff]
    %v98 = vld [vmem:[#allocation5 + $0x60] sm:$0xff]
    %v99 = vld [vmem:[#allocation5 + $0x68] sm:$0xff]
    %v100 = vld [vmem:[#allocation5 + $0x70] sm:$0xff]
    %v101 = vld [vmem:[#allocation5 + $0x78] sm:$0xff]
    %s102 = scalar_lea.vmem [#allocation7], 5
    %v103 = vld [vmem:[%s102] ss:$8 sm:$0x3]
    %v105 = vlaneseq
    %v106 = vshrl.u32 %v105, 7
    %v107 = vsub.s32 0, %v106
    %v108 = vrot.slane %v103, %v107
    %v109 = vlaneseq
    %v110 = vshrl.u32 %v109, 7
    %v111 = vsub.s32 1, %v110
    %v112 = vrot.slane %v103, %v111
    %v131 = vunpack.c.l.b16 %v86
    %v132 = vunpack.c.h.b16 %v86
    %v133 = vunpack.c.l.b16 %v87
    %v134 = vunpack.c.h.b16 %v87
    %v135 = vunpack.c.l.b16 %v88
    %v136 = vunpack.c.h.b16 %v88
    %v137 = vunpack.c.l.b16 %v89
    %v138 = vunpack.c.h.b16 %v89
    %v139 = vunpack.c.l.b16 %v90
    %v140 = vunpack.c.h.b16 %v90
    %v141 = vunpack.c.l.b16 %v91
    %v142 = vunpack.c.h.b16 %v91
    %v143 = vunpack.c.l.b16 %v92
    %v144 = vunpack.c.h.b16 %v92
    %v145 = vunpack.c.l.b16 %v93
    %v146 = vunpack.c.h.b16 %v93
    %v147 = vunpack.c.l.b16 %v94
    %v148 = vunpack.c.h.b16 %v94
    %v149 = vunpack.c.l.b16 %v95
    %v150 = vunpack.c.h.b16 %v95
    %v151 = vunpack.c.l.b16 %v96
    %v152 = vunpack.c.h.b16 %v96
    %v153 = vunpack.c.l.b16 %v97
    %v154 = vunpack.c.h.b16 %v97
    %v155 = vunpack.c.l.b16 %v98
    %v156 = vunpack.c.h.b16 %v98
    %v157 = vunpack.c.l.b16 %v99
    %v158 = vunpack.c.h.b16 %v99
    %v159 = vunpack.c.l.b16 %v100
    %v160 = vunpack.c.h.b16 %v100
    %v161 = vunpack.c.l.b16 %v101
    %v162 = vunpack.c.h.b16 %v101
    %v163 = vpack.c.b16 %v133, %v131
    %v164 = vpack.c.b16 %v134, %v132
    %v165 = vpack.c.b16 %v137, %v135
    %v166 = vpack.c.b16 %v138, %v136
    %v167 = vpack.c.b16 %v141, %v139
    %v168 = vpack.c.b16 %v142, %v140
    %v169 = vpack.c.b16 %v145, %v143
    %v170 = vpack.c.b16 %v146, %v144
    %v171 = vpack.c.b16 %v149, %v147
    %v172 = vpack.c.b16 %v150, %v148
    %v173 = vpack.c.b16 %v153, %v151
    %v174 = vpack.c.b16 %v154, %v152
    %v175 = vpack.c.b16 %v157, %v155
    %v176 = vpack.c.b16 %v158, %v156
    %v177 = vpack.c.b16 %v161, %v159
    %v178 = vpack.c.b16 %v162, %v160
    %195 = vmatprep.subr.bf16.mxu0 %v178
    %196 = vmatpush1.bf16.msra.mxu0 %v177
    %197 = vmatprep.subr.bf16.mxu0 %v176
    %198 = vmatpush1.bf16.msra.mxu0 %v175
    %199 = vmatprep.subr.bf16.mxu0 %v174
    %200 = vmatpush1.bf16.msra.mxu0 %v173
    %201 = vmatprep.subr.bf16.mxu0 %v172
    %202 = vmatpush1.bf16.msra.mxu0 %v171
    %203 = vmatprep.subr.bf16.mxu0 %v170
    %204 = vmatpush1.bf16.msra.mxu0 %v169
    %205 = vmatprep.subr.bf16.mxu0 %v168
    %206 = vmatpush1.bf16.msra.mxu0 %v167
    %207 = vmatprep.subr.bf16.mxu0 %v166
    %208 = vmatpush1.bf16.msra.mxu0 %v165
    %209 = vmatprep.subr.bf16.mxu0 %v164
    %210 = vmatpush1.bf16.msra.mxu0 %v163
    %211 = vmatprep.subr.bf16.mxu0 0
    %212 = vmatpush2.bf16.msra.mxu0 0
    %213 = vmatprep.subr.bf16.mxu0 0
    %214 = vmatpush2.bf16.msra.mxu0 0
    %215 = vmatprep.subr.bf16.mxu0 0
    %216 = vmatpush2.bf16.msra.mxu0 0
    %217 = vmatprep.subr.bf16.mxu0 0
    %218 = vmatpush2.bf16.msra.mxu0 0
    %219 = vmatprep.subr.bf16.mxu0 0
    %220 = vmatpush2.bf16.msra.mxu0 0
    %221 = vmatprep.subr.bf16.mxu0 0
    %222 = vmatpush2.bf16.msra.mxu0 0
    %223 = vmatprep.subr.bf16.mxu0 0
    %224 = vmatpush2.bf16.msra.mxu0 0
    %225 = vmatprep.subr.bf16.mxu0 0
    %226 = vmatpush2.bf16.msra.mxu0 0
    %227 = vmatprep.mubr.bf16.mxu0 0
    %228 = vmatmul.mubr.bf16.gmra.mxu0 %v85
    %v229 = vpop.f32.mrf.mxu0
    %v230 = vadd.f32 %v108, %v229
    %v231 = vpop.f32.mrf.mxu0
    %v232 = vadd.f32 %v112, %v231
    %v233 = vpop.f32.mrf.mxu0
    %v234 = vpop.f32.mrf.mxu0
    %235 = vdwg.mxu0
    %v236 = vmax.f32 %v230, 0.0
    %v237 = vmax.f32 %v232, 0.0
    %v238 = vpack.c.bf16 %v236, %v236
    %v239 = vpack.c.bf16 %v237, %v237
    %v240 = vld [vmem:[#allocation5 + $0x80] sm:$0xf]
    %v241 = vld [vmem:[#allocation5 + $0x88] sm:$0xf]
    %v242 = vld [vmem:[#allocation5 + $0x90] sm:$0xf]
    %v243 = vld [vmem:[#allocation5 + $0x98] sm:$0xf]
    %v244 = vld [vmem:[#allocation5 + $0xa0] sm:$0xf]
    %v245 = vld [vmem:[#allocation5 + $0xa8] sm:$0xf]
    %v246 = vld [vmem:[#allocation5 + $0xb0] sm:$0xf]
    %v247 = vld [vmem:[#allocation5 + $0xb8] sm:$0xf]
    %v248 = vld [vmem:[#allocation5 + $0xc0] sm:$0xf]
    %v249 = vld [vmem:[#allocation5 + $0xc8] sm:$0xf]
    %v250 = vld [vmem:[#allocation5 + $0xd0] sm:$0xf]
    %v251 = vld [vmem:[#allocation5 + $0xd8] sm:$0xf]
    %v252 = vld [vmem:[#allocation5 + $0xe0] sm:$0xf]
    %v253 = vld [vmem:[#allocation5 + $0xe8] sm:$0xf]
    %v254 = vld [vmem:[#allocation5 + $0xf0] sm:$0xf]
    %v255 = vld [vmem:[#allocation5 + $0xf8] sm:$0xf]
    %v256 = vld [vmem:[#allocation5 + $0x100] sm:$0xf]
    %v257 = vld [vmem:[#allocation5 + $0x108] sm:$0xf]
    %v258 = vld [vmem:[#allocation5 + $0x110] sm:$0xf]
    %v259 = vld [vmem:[#allocation5 + $0x118] sm:$0xf]
    %v260 = vld [vmem:[#allocation5 + $0x120] sm:$0xf]
    %v261 = vld [vmem:[#allocation5 + $0x128] sm:$0xf]
    %v262 = vld [vmem:[#allocation5 + $0x130] sm:$0xf]
    %v263 = vld [vmem:[#allocation5 + $0x138] sm:$0xf]
    %v264 = vld [vmem:[#allocation5 + $0x140] sm:$0xf]
    %v265 = vld [vmem:[#allocation5 + $0x148] sm:$0xf]
    %v266 = vld [vmem:[#allocation5 + $0x150] sm:$0xf]
    %v267 = vld [vmem:[#allocation5 + $0x158] sm:$0xf]
    %v268 = vld [vmem:[#allocation5 + $0x160] sm:$0xf]
    %v269 = vld [vmem:[#allocation5 + $0x168] sm:$0xf]
    %v270 = vld [vmem:[#allocation5 + $0x170] sm:$0xf]
    %v271 = vld [vmem:[#allocation5 + $0x178] sm:$0xf]
    %v272 = vld [vmem:[#allocation7 + $0xc] ss:$0 sm:$0xff]
    %v305 = vunpack.c.l.b16 %v240
    %v306 = vunpack.c.l.b16 %v241
    %v307 = vunpack.c.l.b16 %v242
    %v308 = vunpack.c.l.b16 %v243
    %v309 = vunpack.c.l.b16 %v244
    %v310 = vunpack.c.l.b16 %v245
    %v311 = vunpack.c.l.b16 %v246
    %v312 = vunpack.c.l.b16 %v247
    %v313 = vunpack.c.l.b16 %v248
    %v314 = vunpack.c.l.b16 %v249
    %v315 = vunpack.c.l.b16 %v250
    %v316 = vunpack.c.l.b16 %v251
    %v317 = vunpack.c.l.b16 %v252
    %v318 = vunpack.c.l.b16 %v253
    %v319 = vunpack.c.l.b16 %v254
    %v320 = vunpack.c.l.b16 %v255
    %v321 = vunpack.c.l.b16 %v256
    %v322 = vunpack.c.l.b16 %v257
    %v323 = vunpack.c.l.b16 %v258
    %v324 = vunpack.c.l.b16 %v259
    %v325 = vunpack.c.l.b16 %v260
    %v326 = vunpack.c.l.b16 %v261
    %v327 = vunpack.c.l.b16 %v262
    %v328 = vunpack.c.l.b16 %v263
    %v329 = vunpack.c.l.b16 %v264
    %v330 = vunpack.c.l.b16 %v265
    %v331 = vunpack.c.l.b16 %v266
    %v332 = vunpack.c.l.b16 %v267
    %v333 = vunpack.c.l.b16 %v268
    %v334 = vunpack.c.l.b16 %v269
    %v335 = vunpack.c.l.b16 %v270
    %v336 = vunpack.c.l.b16 %v271
    %v337 = vpack.c.b16 %v306, %v305
    %v338 = vpack.c.b16 %v308, %v307
    %v339 = vpack.c.b16 %v310, %v309
    %v340 = vpack.c.b16 %v312, %v311
    %v341 = vpack.c.b16 %v314, %v313
    %v342 = vpack.c.b16 %v316, %v315
    %v343 = vpack.c.b16 %v318, %v317
    %v344 = vpack.c.b16 %v320, %v319
    %v345 = vpack.c.b16 %v322, %v321
    %v346 = vpack.c.b16 %v324, %v323
    %v347 = vpack.c.b16 %v326, %v325
    %v348 = vpack.c.b16 %v328, %v327
    %v349 = vpack.c.b16 %v330, %v329
    %v350 = vpack.c.b16 %v332, %v331
    %v351 = vpack.c.b16 %v334, %v333
    %v352 = vpack.c.b16 %v336, %v335
    %369 = vmatprep.subr.bf16.mxu0 0
    %370 = vmatpush1.bf16.msra.mxu0 %v344
    %371 = vmatprep.subr.bf16.mxu0 0
    %372 = vmatpush1.bf16.msra.mxu0 %v343
    %373 = vmatprep.subr.bf16.mxu0 0
    %374 = vmatpush1.bf16.msra.mxu0 %v342
    %375 = vmatprep.subr.bf16.mxu0 0
    %376 = vmatpush1.bf16.msra.mxu0 %v341
    %377 = vmatprep.subr.bf16.mxu0 0
    %378 = vmatpush1.bf16.msra.mxu0 %v340
    %379 = vmatprep.subr.bf16.mxu0 0
    %380 = vmatpush1.bf16.msra.mxu0 %v339
    %381 = vmatprep.subr.bf16.mxu0 0
    %382 = vmatpush1.bf16.msra.mxu0 %v338
    %383 = vmatprep.subr.bf16.mxu0 0
    %384 = vmatpush1.bf16.msra.mxu0 %v337
    %385 = vmatprep.subr.bf16.mxu0 0
    %386 = vmatpush2.bf16.msra.mxu0 %v352
    %387 = vmatprep.subr.bf16.mxu0 0
    %388 = vmatpush2.bf16.msra.mxu0 %v351
    %389 = vmatprep.subr.bf16.mxu0 0
    %390 = vmatpush2.bf16.msra.mxu0 %v350
    %391 = vmatprep.subr.bf16.mxu0 0
    %392 = vmatpush2.bf16.msra.mxu0 %v349
    %393 = vmatprep.subr.bf16.mxu0 0
    %394 = vmatpush2.bf16.msra.mxu0 %v348
    %395 = vmatprep.subr.bf16.mxu0 0
    %396 = vmatpush2.bf16.msra.mxu0 %v347
    %397 = vmatprep.subr.bf16.mxu0 0
    %398 = vmatpush2.bf16.msra.mxu0 %v346
    %399 = vmatprep.subr.bf16.mxu0 0
    %400 = vmatpush2.bf16.msra.mxu0 %v345
    %401 = vmatprep.mubr.bf16.mxu0 %v239
    %402 = vmatmul.mubr.bf16.gmra.mxu0 %v238
    %v403 = vpop.f32.mrf.mxu0
    %v404 = vadd.f32 %v272, %v403
    %v405 = vpop.f32.mrf.mxu0
    %v406 = vpop.f32.mrf.mxu0
    %v407 = vpop.f32.mrf.mxu0
    %408 = vdwg.mxu0
    %vm409 = vcmask 1041408
    %v410 = vsel %vm409, %v404, 0.0
    %411 = vadd.xlane.f32.xlu0 %v410
    %v412 = vpop.xlane.xlu0 %411
    %v413 = vrot.slane %v412, 4
    %v414 = vadd.f32 %v412, %v413
    %v415 = vrot.slane %v414, 2
    %v416 = vadd.f32 %v414, %v415
    %v417 = vrot.slane %v416, 1
    %v418 = vadd.f32 %v416, %v417
    %s419 = vtos %v418
    %421 = vrot.lane.b32.xlu0 %v404, 126
    %v422 = vpop.permute.xlu0 %421
    %vm424 = vcmask 1024
    %v425 = vsel %vm424, %v422, 0.0
    %426 = vadd.xlane.f32.xlu0 %v425
    %v427 = vpop.xlane.xlu0 %426
    %v428 = vrot.slane %v427, 4
    %v429 = vadd.f32 %v427, %v428
    %v430 = vrot.slane %v429, 2
    %v431 = vadd.f32 %v429, %v430
    %v432 = vrot.slane %v431, 1
    %v433 = vadd.f32 %v431, %v432
    %s434 = vtos %v433
    %s435 = ssub.f32 %s419, %s434
    %s436 = smul.f32 %s435, 0.25
    %437 = vset.pattern.permute.xlu0 2
    %438 = vperm.xlu0 %437, %v404
    %v439 = vpop.permute.xlu0 %438
    %v441 = vadd.f32 %v404, %v439
    %v442 = vstv %s436
    %v443 = vsub.f32 %v441, %v442
    %vm444 = vcmask 9216
    %445 = vst.msk [vmem:[#allocation8] sm:$0x3] %vm444, %v443
    // Predicated region
    $region26: #{tpu_custom_call.1} parent=1 // pred_check
      _
    $region27: #{tpu_custom_call.1} parent=1 // pred_check_branch
      %447 = sbr.rel (0) target = $region29
    $region28: #{tpu_custom_call.1} parent=1 // pred_region
      %s449 = ssub.s32 32, 32
      %450 = vsyncadd [#allocation4], %s449
      %s452 = sshll.u32 [#allocation8], 4
      %s453 = int_to_ptr.vmem [resolvable:$true] %s452
      %455 = dma.vmem_to_hbm [thread:$0]  %s453, 32, %s3, [#allocation4]
    $region29: #{tpu_custom_call.1} parent=1 // pred_fallthru
      _
    // Predicated region
    $region30: #{tpu_custom_call.1} parent=1 // pred_check
      _
    $region31: #{tpu_custom_call.1} parent=1 // pred_check_branch
      %457 = sbr.rel (0) target = $region33
    $region32: #{tpu_custom_call.1} parent=1 // pred_region
      %458 = dma.done [#allocation4], 32
    $region33: #{tpu_custom_call.1} parent=1 // pred_fallthru
      _
    %459 = vsyncpa [#allocation3], 1
    %460 = vsyncpa [#allocation6], 1
    %461 = vsyncpa [#allocation4], 1

</llo_original>
